<compile_context>
chip_gen: v7x
topology: tpu7x:2x2x1
jax: 0.10.0
libtpu: 0.0.40
codegen_flags: <defaults>
</compile_context>

<pallas_src>
import functools

import jax
import jax.numpy as jnp
from jax.experimental import pallas as pl
from jax.experimental.pallas import tpu as pltpu


def _round_up(n, m):
    return ((n + m - 1) // m) * m


def _cdiv(a, b):
    return -(-a // b)


def _linear_kernel(x_ref, wt_ref, b_ref, o_ref):
    # x_ref:  (TM, K)  f32   (cast to bf16 here -> no extra HBM pass outside)
    # wt_ref: (K, N)   f32   (pre-transposed weight, VMEM-resident)
    # b_ref:  (1, N)   f32
    # o_ref:  (TM, N)  f32   (narrow, unpadded output)
    x = x_ref[...].astype(jnp.bfloat16)
    w = wt_ref[...].astype(jnp.bfloat16)
    y = jnp.dot(x, w, preferred_element_type=jnp.float32)   # f32 MXU accumulate
    o_ref[...] = y + b_ref[...]                              # bias add in f32


def _choose_tm(n, k, tm_cap):
    """Batch-tile size: multiple of 16, ~2 MiB of f32 x per step, >=2 tiles."""
    n16 = _round_up(n, 16)
    rows_for_2mib = max(16, (2 * 1024 * 1024) // (4 * k))
    tm_max = max(16, (min(tm_cap, rows_for_2mib) // 16) * 16)
    if n16 <= 16:
        return 16, 1
    num_tiles = max(2, _cdiv(n16, tm_max))   # >=2 so both v7x TCs get work
    tm = _round_up(_cdiv(n16, num_tiles), 16)
    num_tiles = _cdiv(n16, tm)
    return tm, num_tiles


@functools.partial(jax.jit, static_argnames=("tm_cap",))
def linear_net_forward(x, weight, bias, *, tm_cap=4096):
    """Forward pass of LinearNet: y = flatten(x) @ W^T + b.

    x:      (N, C, H, W) float32 (NCHW, like PyTorch)
    weight: (num_outputs, num_inputs)  (PyTorch nn.Linear convention)
    bias:   (num_outputs,)
    returns (N, num_outputs) float32
    """
    n = x.shape[0]
    x_flat = x.reshape(n, -1)                     # x.view(x.shape[0], -1)
    k = x_flat.shape[1]
    num_outputs = weight.shape[0]

    tm, num_tiles = _choose_tm(n, k, tm_cap)
    n_p = num_tiles * tm

    # Only pad rows when the batch is ragged w.r.t. the chosen tile; no dtype
    # cast and no lane padding in the wrapper.
    if n_p != n:
        x_flat = jnp.pad(x_flat, ((0, n_p - n), (0, 0)))

    wt = weight.T                                 # (K, num_outputs), one-time & tiny
    b2 = bias.reshape(1, num_outputs).astype(jnp.float32)

    out = pl.pallas_call(
        _linear_kernel,
        out_shape=jax.ShapeDtypeStruct((n_p, num_outputs), jnp.float32),
        grid_spec=pl.GridSpec(
            grid=(num_tiles,),
            in_specs=[
                # x tile: pipelined over the batch axis (double-buffered DMA).
                pl.BlockSpec((tm, k), lambda i: (i, 0)),
                # weight^T and bias: whole (tiny) arrays, VMEM-resident.
                pl.BlockSpec((k, num_outputs), lambda i: (0, 0)),
                pl.BlockSpec((1, num_outputs), lambda i: (0, 0)),
            ],
            # Narrow output block -- last dim equals the full array dim, so the
            # (8,128) divisibility rule is satisfied via the full-dim exception.
            out_specs=pl.BlockSpec((tm, num_outputs), lambda i: (i, 0)),
        ),
        compiler_params=pltpu.CompilerParams(
            dimension_semantics=("parallel",),    # megacore-shardable batch axis
        ),
    )(x_flat, wt, b2)

    return out if n_p == n else out[:n]           # row-only slice, only if padded


if __name__ == "__main__":
    key = jax.random.PRNGKey(0)
    k_x, k_w, k_b = jax.random.split(key, 3)

    # Small shapes consistent with the module: flatten NCHW -> num_inputs.
    # batch=32 (multiple of 16) -> no row padding, and the grid has 2 tiles.
    batch, c, h, w = 32, 4, 16, 16
    num_inputs = c * h * w          # 1024
    num_outputs = 10

    x = jax.random.normal(k_x, (batch, c, h, w), dtype=jnp.float32)

    # Deterministic parameter init (PyTorch-style uniform bounds).
    bound = 1.0 / (num_inputs ** 0.5)
    weight = jax.random.uniform(k_w, (num_outputs, num_inputs),
                                minval=-bound, maxval=bound, dtype=jnp.float32)
    bias = jax.random.uniform(k_b, (num_outputs,),
                              minval=-bound, maxval=bound, dtype=jnp.float32)

    y = linear_net_forward(x, weight, bias)
    jax.block_until_ready(y)

    # Reference check with matching bf16 input rounding and f32 accumulation.
    x_bf = x.reshape(batch, -1).astype(jnp.bfloat16).astype(jnp.float32)
    w_bf = weight.astype(jnp.bfloat16).astype(jnp.float32)
    y_ref = x_bf @ w_bf.T + bias

    assert y.shape == (batch, num_outputs)
    assert y.dtype == jnp.float32
    assert jnp.allclose(y, y_ref, atol=1e-3, rtol=1e-3)

    print("KERNEL_OK")
</pallas_src>

<mosaic_0001>
module attributes {stable_mosaic.version = 11 : i64} {
  func.func @_linear_kernel(%arg0: i32, %arg1: memref<16x1024xf32, #tpu.memory_space<vmem>>, %arg2: memref<1024x10xf32, #tpu.memory_space<vmem>>, %arg3: memref<1x10xf32, #tpu.memory_space<vmem>>, %arg4: memref<16x10xf32, #tpu.memory_space<vmem>>) attributes {dimension_semantics = [#tpu.dimension_semantics<parallel>], iteration_bounds = array<i64: 2>, scalar_prefetch = 0 : i64, scratch_operands = 0 : i64, tpu.core_type = #tpu.core_type<tc>, window_params = [{transform_indices = @transform_0, window_bounds = array<i64: 16, 1024>}, {pipeline_mode = #tpu.pipeline_mode<synchronous>, transform_indices = @transform_1, window_bounds = array<i64: 1024, 10>}, {pipeline_mode = #tpu.pipeline_mode<synchronous>, transform_indices = @transform_2, window_bounds = array<i64: 1, 10>}, {transform_indices = @transform_3, window_bounds = array<i64: 16, 10>}]} {
    %c0 = arith.constant 0 : index
    %c0_0 = arith.constant 0 : index
    %0 = vector.load %arg1[%c0, %c0_0] : memref<16x1024xf32, #tpu.memory_space<vmem>>, vector<16x1024xf32>
    %1 = arith.truncf %0 : vector<16x1024xf32> to vector<16x1024xbf16>
    %c0_1 = arith.constant 0 : index
    %c0_2 = arith.constant 0 : index
    %2 = vector.load %arg2[%c0_1, %c0_2] : memref<1024x10xf32, #tpu.memory_space<vmem>>, vector<1024x10xf32>
    %3 = arith.truncf %2 : vector<1024x10xf32> to vector<1024x10xbf16>
    %cst = arith.constant dense<0.000000e+00> : vector<16x10xf32>
    %4 = tpu.matmul %1, %3, %cst {dimension_numbers = #tpu.dot_dimension_numbers<[1], [0], [0], [1], [0, 0, 1, 1], [], []>} : vector<16x1024xbf16>, vector<1024x10xbf16>, vector<16x10xf32> -> vector<16x10xf32>
    %c0_3 = arith.constant 0 : index
    %c0_4 = arith.constant 0 : index
    %5 = vector.load %arg3[%c0_3, %c0_4] : memref<1x10xf32, #tpu.memory_space<vmem>>, vector<1x10xf32>
    %6 = vector.broadcast %5 : vector<1x10xf32> to vector<16x10xf32>
    %7 = arith.addf %4, %6 : vector<16x10xf32>
    %c0_5 = arith.constant 0 : index
    %c0_6 = arith.constant 0 : index
    %8 = vector.load %arg4[%c0_5, %c0_6] : memref<16x10xf32, #tpu.memory_space<vmem>>, vector<16x10xf32>
    tpu.vector_store %arg4[%c0_5, %c0_6], %7 {strides = array<i32>} : memref<16x10xf32, #tpu.memory_space<vmem>>, vector<16x10xf32>,
    return
  }
  func.func @transform_0(%arg0: i32) -> (i32, i32) {
    %c0_i32 = arith.constant 0 : i32
    %c0_i32_0 = arith.constant 0 : i32
    return %arg0, %c0_i32 : i32, i32
  }
  func.func @transform_1(%arg0: i32) -> (i32, i32) {
    %c0_i32 = arith.constant 0 : i32
    %c0_i32_0 = arith.constant 0 : i32
    %c0_i32_1 = arith.constant 0 : i32
    return %c0_i32, %c0_i32_0 : i32, i32
  }
  func.func @transform_2(%arg0: i32) -> (i32, i32) {
    %c0_i32 = arith.constant 0 : i32
    %c0_i32_0 = arith.constant 0 : i32
    %c0_i32_1 = arith.constant 0 : i32
    return %c0_i32, %c0_i32_0 : i32, i32
  }
  func.func @transform_3(%arg0: i32) -> (i32, i32) {
    %c0_i32 = arith.constant 0 : i32
    %c0_i32_0 = arith.constant 0 : i32
    return %arg0, %c0_i32 : i32, i32
  }
}

</mosaic_0001>

<llo_original>
// kernel: linear_net_forward.1
$region0: #{linear_net_forward.1}
  #allocation0 [shape = 'u32[]', space=smem, size = 0x4, offset = 0x4, fixed_abs, tag = 'smem constant byte address 0x4 - core index']
  #allocation1 [shape = 'u32[144,128]{1,0:T(1,128)}', space=vmem, size = 0x12000, scoped, tag = 'internal scratch']
  %s0 = inlined_call_operand.vmem [shape: f32[32,1024], index: 0, kind: input, shape index: {}]
  %s1 = inlined_call_operand.vmem [shape: f32[1024,10], index: 1, kind: input, shape index: {}]
  %s2 = inlined_call_operand.vmem [shape: f32[1,10], index: 2, kind: input, shape index: {}]
  %s3 = inlined_call_operand.vmem [shape: f32[32,10], index: 3, kind: output, shape index: {}]
  %s4 = sld [smem:[#allocation0]]
  $region45: #{linear_net_forward.1} parent=0
    _
  %s6 = ssub.s32 1, %s4
  %s7 = scalar_select 0, %s6, %s4
  loop: start=0, step=1, limit=4
  $region2: #{linear_net_forward.1} parent=0 // loop_pre_header
    _
  $region3: #{linear_net_forward.1} parent=0 // loop_header
    %s9 = sphi 0, %s13
    %p10 = scmp.ge.s32.totalorder %s9, 4
    %s19 = sphi 0, %s21
    %s22 = sphi 0, %s19
    %s23 = sphi 0, %s22
    %s39 = sphi 0, %s23
    %s43 = sphi 0, %s43
    %s45 = sphi 0, %s43
    %s46 = sphi 0, %s45
    %s60 = sphi 0, %s46
    %s64 = sphi 0, %s64
    %s66 = sphi 0, %s64
    %s67 = sphi 0, %s66
    %s81 = sphi 0, %s67
    %s87 = sphi 0, %s89
    %s90 = sphi 0, %s87
    %s91 = sphi 0, %s90
    %s107 = sphi 0, %s91
  $region4: #{linear_net_forward.1} parent=0 // loop_header_branch
    %12 = sbr.rel (%p10) target = $region8
  $region5: #{linear_net_forward.1} parent=0 // loop_body
    %s14 = ssub.s32 %s9, 1
    %s15 = ssub.s32 %s9, 2
    %s16 = sadd.s32 %s9, 1
    %s17 = ssub.s32 %s9, %s16
    %p18 = scmp.eq.s32.totalorder %s17, 0
    %s20 = sadd.s32 %s19, 1
    %s21 = scalar_select %p18, %s19, %s20
    %p24 = pneg %p18
    %p25 = scmp.eq.s32.totalorder %s9, 1
    %p26 = por %p24, %p25
    %p27 = scmp.ne.s32.totalorder %s19, %s22
    %p28 = scmp.eq.s32.totalorder %s9, 0
    %p29 = por %p27, %p28
    %p30 = scmp.ne.s32.totalorder %s19, %s22
    %p31 = scmp.eq.s32.totalorder %s14, 1
    %p32 = por %p30, %p31
    %p33 = scmp.ne.s32.totalorder %s22, %s23
    %p34 = scmp.eq.s32.totalorder %s14, 0
    %p35 = por %p33, %p34
    %p36 = scmp.ne.s32.totalorder %s22, %s23
    %p37 = scmp.eq.s32.totalorder %s15, 1
    %p38 = por %p36, %p37
    %p40 = scmp.ne.s32.totalorder %s23, %s39
    %p41 = scmp.eq.s32.totalorder %s15, 0
    %p42 = por %p40, %p41
    %s44 = sadd.s32 %s43, 1
    %p47 = scmp.eq.s32.totalorder %s9, 1
    %p48 = scmp.ne.s32.totalorder %s43, %s45
    %p49 = scmp.eq.s32.totalorder %s9, 0
    %p50 = por %p48, %p49
    %p51 = scmp.ne.s32.totalorder %s43, %s45
    %p52 = scmp.eq.s32.totalorder %s14, 1
    %p53 = por %p51, %p52
    %p54 = scmp.ne.s32.totalorder %s45, %s46
    %p55 = scmp.eq.s32.totalorder %s14, 0
    %p56 = por %p54, %p55
    %p57 = scmp.ne.s32.totalorder %s45, %s46
    %p58 = scmp.eq.s32.totalorder %s15, 1
    %p59 = por %p57, %p58
    %p61 = scmp.ne.s32.totalorder %s46, %s60
    %p62 = scmp.eq.s32.totalorder %s15, 0
    %p63 = por %p61, %p62
    %s65 = sadd.s32 %s64, 1
    %p68 = scmp.eq.s32.totalorder %s9, 1
    %p69 = scmp.ne.s32.totalorder %s64, %s66
    %p70 = scmp.eq.s32.totalorder %s9, 0
    %p71 = por %p69, %p70
    %p72 = scmp.ne.s32.totalorder %s64, %s66
    %p73 = scmp.eq.s32.totalorder %s14, 1
    %p74 = por %p72, %p73
    %p75 = scmp.ne.s32.totalorder %s66, %s67
    %p76 = scmp.eq.s32.totalorder %s14, 0
    %p77 = por %p75, %p76
    %p78 = scmp.ne.s32.totalorder %s66, %s67
    %p79 = scmp.eq.s32.totalorder %s15, 1
    %p80 = por %p78, %p79
    %p82 = scmp.ne.s32.totalorder %s67, %s81
    %p83 = scmp.eq.s32.totalorder %s15, 0
    %p84 = por %p82, %p83
    %s85 = ssub.s32 %s9, %s16
    %p86 = scmp.eq.s32.totalorder %s85, 0
    %s88 = sadd.s32 %s87, 1
    %s89 = scalar_select %p86, %s87, %s88
    %p92 = pneg %p86
    %p93 = scmp.eq.s32.totalorder %s9, 1
    %p94 = por %p92, %p93
    %p95 = scmp.ne.s32.totalorder %s87, %s90
    %p96 = scmp.eq.s32.totalorder %s9, 0
    %p97 = por %p95, %p96
    %p98 = scmp.ne.s32.totalorder %s87, %s90
    %p99 = scmp.eq.s32.totalorder %s14, 1
    %p100 = por %p98, %p99
    %p101 = scmp.ne.s32.totalorder %s90, %s91
    %p102 = scmp.eq.s32.totalorder %s14, 0
    %p103 = por %p101, %p102
    %p104 = scmp.ne.s32.totalorder %s90, %s91
    %p105 = scmp.eq.s32.totalorder %s15, 1
    %p106 = por %p104, %p105
    %p108 = scmp.ne.s32.totalorder %s91, %s107
    %p109 = scmp.eq.s32.totalorder %s15, 0
    %p110 = por %p108, %p109
    %p111 = scmp.le.s32.totalorder 1, %s9
    %p112 = scmp.lt.s32.totalorder %s9, 3
    %p113 = pnand %p111, %p112
    %p114 = pneg %p113
    // Predicated region
    $region9: #{linear_net_forward.1} parent=5 // pred_check
      _
    $region10: #{linear_net_forward.1} parent=5 // pred_check_branch
      %116 = sbr.rel (%p113) target = $region12
    $region11: #{linear_net_forward.1} parent=5 // pred_region
      %s117 = ssub.s32 %s9, 1
      // Predicated region
      $region13: #{linear_net_forward.1} parent=11 // pred_check
        %p118 = pneg %p56
      $region14: #{linear_net_forward.1} parent=11 // pred_check_branch
        %120 = sbr.rel (%p118) target = $region16
      $region15: #{linear_net_forward.1} parent=11 // pred_region
        _
      $region16: #{linear_net_forward.1} parent=11 // pred_fallthru
        _
      // Predicated region
      $region17: #{linear_net_forward.1} parent=11 // pred_check
        %p121 = pneg %p77
      $region18: #{linear_net_forward.1} parent=11 // pred_check_branch
        %123 = sbr.rel (%p121) target = $region20
      $region19: #{linear_net_forward.1} parent=11 // pred_region
        _
      $region20: #{linear_net_forward.1} parent=11 // pred_fallthru
        _
    $region12: #{linear_net_forward.1} parent=5 // pred_fallthru
      _
    %p124 = scmp.lt.s32.totalorder %s9, 2
    // Predicated region
    $region21: #{linear_net_forward.1} parent=5 // pred_check
      %p125 = pneg %p124
    $region22: #{linear_net_forward.1} parent=5 // pred_check_branch
      %127 = sbr.rel (%p125) target = $region24
    $region23: #{linear_net_forward.1} parent=5 // pred_region
      // Predicated region
      $region25: #{linear_net_forward.1} parent=23 // pred_check
        %p128 = pneg %p29
      $region26: #{linear_net_forward.1} parent=23 // pred_check_branch
        %130 = sbr.rel (%p128) target = $region28
      $region27: #{linear_net_forward.1} parent=23 // pred_region
        %s131 = smul.u32 2, %s9
        %p132 = scmp.lt.s32.totalorder %s131, 3
        %s133 = scalar_select %p132, %s131, 3
        %s134 = smul.addr %s133, 8
        %s135 = smul.addr %s134, 8
        %s136 = scalar_lea.vmem %s0, %s135
        %s137 = smul.u32 2, %s9
      $region28: #{linear_net_forward.1} parent=23 // pred_fallthru
        _
    $region24: #{linear_net_forward.1} parent=5 // pred_fallthru
      _
    %p138 = scmp.le.s32.totalorder 1, %s9
    %p139 = scmp.lt.s32.totalorder %s9, 3
    %p140 = pnand %p138, %p139
    %p141 = pneg %p140
    // Predicated region
    $region29: #{linear_net_forward.1} parent=5 // pred_check
      _
    $region30: #{linear_net_forward.1} parent=5 // pred_check_branch
      %143 = sbr.rel (%p140) target = $region32
    $region31: #{linear_net_forward.1} parent=5 // pred_region
      %s144 = ssub.s32 %s9, 1
      %s145 = smul.u32 2, %s14
      %p146 = scmp.lt.s32.totalorder %s145, 3
      %s147 = scalar_select %p146, %s145, 3
      %s148 = smul.addr %s147, 8
      %s149 = smul.addr %s148, 8
      %s150 = scalar_lea.vmem %s0, %s149
      %p151 = pneg %p35
      %p152 = pneg %p32
      %p153 = pneg %p56
      %p154 = pneg %p53
      %p155 = pneg %p77
      %p156 = pneg %p74
      %p157 = pneg %p103
      %p158 = pneg %p100
      %s159 = smul.u32 2, %s14
      %p160 = scmp.lt.s32.totalorder %s159, 3
      %s161 = scalar_select %p160, %s159, 3
      %s162 = smul.addr %s161, 8
      %s163 = scalar_lea.vmem %s3, %s162
      %s164 = smul.u32 2, %s14
      %p165 = scmp.lt.s32.totalorder %s164, 3
      %s166 = scalar_select %p165, %s164, 3
      %s167 = smul.addr %s166, 8
      %s168 = smul.addr %s167, 8
      %s169 = scalar_lea.vmem %s0, %s168
      %s170 = smul.u32 2, %s14
      %s171 = smul.u32 2, %s14
      %p172 = scmp.lt.s32.totalorder %s171, 3
      %s173 = scalar_select %p172, %s171, 3
      %s174 = smul.addr %s173, 8
      %s175 = scalar_lea.vmem %s3, %s174
      %s176 = smul.u32 2, %s14
      %v178 = vld [vmem:[%s169] sm:$0xff]
      %v179 = vld [vmem:[%s169 + $0x8] sm:$0xff]
      %v180 = vld [vmem:[%s169 + $0x10] sm:$0xff]
      %v181 = vld [vmem:[%s169 + $0x18] sm:$0xff]
      %v182 = vld [vmem:[%s169 + $0x20] sm:$0xff]
      %v183 = vld [vmem:[%s169 + $0x28] sm:$0xff]
      %v184 = vld [vmem:[%s169 + $0x30] sm:$0xff]
      %v185 = vld [vmem:[%s169 + $0x38] sm:$0xff]
      %v186 = vld [vmem:[%s169 + $0x40] sm:$0xff]
      %v187 = vld [vmem:[%s169 + $0x48] sm:$0xff]
      %v188 = vld [vmem:[%s169 + $0x50] sm:$0xff]
      %v189 = vld [vmem:[%s169 + $0x58] sm:$0xff]
      %v190 = vld [vmem:[%s169 + $0x60] sm:$0xff]
      %v191 = vld [vmem:[%s169 + $0x68] sm:$0xff]
      %v192 = vld [vmem:[%s169 + $0x70] sm:$0xff]
      %v193 = vld [vmem:[%s169 + $0x78] sm:$0xff]
      %v194 = vpack.c.bf16 %v186, %v178
      %v195 = vpack.c.bf16 %v187, %v179
      %v196 = vpack.c.bf16 %v188, %v180
      %v197 = vpack.c.bf16 %v189, %v181
      %v198 = vpack.c.bf16 %v190, %v182
      %v199 = vpack.c.bf16 %v191, %v183
      %v200 = vpack.c.bf16 %v192, %v184
      %v201 = vpack.c.bf16 %v193, %v185
      %v202 = vld [vmem:[%s1] sm:$0xff]
      %v203 = vld [vmem:[%s1 + $0x8] sm:$0xff]
      %v204 = vld [vmem:[%s1 + $0x10] sm:$0xff]
      %v205 = vld [vmem:[%s1 + $0x18] sm:$0xff]
      %v206 = vld [vmem:[%s1 + $0x20] sm:$0xff]
      %v207 = vld [vmem:[%s1 + $0x28] sm:$0xff]
      %v208 = vld [vmem:[%s1 + $0x30] sm:$0xff]
      %v209 = vld [vmem:[%s1 + $0x38] sm:$0xff]
      %v210 = vld [vmem:[%s1 + $0x40] sm:$0xff]
      %v211 = vld [vmem:[%s1 + $0x48] sm:$0xff]
      %v212 = vld [vmem:[%s1 + $0x50] sm:$0xff]
      %v213 = vld [vmem:[%s1 + $0x58] sm:$0xff]
      %v214 = vld [vmem:[%s1 + $0x60] sm:$0xff]
      %v215 = vld [vmem:[%s1 + $0x68] sm:$0xff]
      %v216 = vld [vmem:[%s1 + $0x70] sm:$0xff]
      %v217 = vld [vmem:[%s1 + $0x78] sm:$0xff]
      %v218 = vld [vmem:[%s1 + $0x80] sm:$0xff]
      %v219 = vld [vmem:[%s1 + $0x88] sm:$0xff]
      %v220 = vld [vmem:[%s1 + $0x90] sm:$0xff]
      %v221 = vld [vmem:[%s1 + $0x98] sm:$0xff]
      %v222 = vld [vmem:[%s1 + $0xa0] sm:$0xff]
      %v223 = vld [vmem:[%s1 + $0xa8] sm:$0xff]
      %v224 = vld [vmem:[%s1 + $0xb0] sm:$0xff]
      %v225 = vld [vmem:[%s1 + $0xb8] sm:$0xff]
      %v226 = vld [vmem:[%s1 + $0xc0] sm:$0xff]
      %v227 = vld [vmem:[%s1 + $0xc8] sm:$0xff]
      %v228 = vld [vmem:[%s1 + $0xd0] sm:$0xff]
      %v229 = vld [vmem:[%s1 + $0xd8] sm:$0xff]
      %v230 = vld [vmem:[%s1 + $0xe0] sm:$0xff]
      %v231 = vld [vmem:[%s1 + $0xe8] sm:$0xff]
      %v232 = vld [vmem:[%s1 + $0xf0] sm:$0xff]
      %v233 = vld [vmem:[%s1 + $0xf8] sm:$0xff]
      %v234 = vld [vmem:[%s1 + $0x100] sm:$0xff]
      %v235 = vld [vmem:[%s1 + $0x108] sm:$0xff]
      %v236 = vld [vmem:[%s1 + $0x110] sm:$0xff]
      %v237 = vld [vmem:[%s1 + $0x118] sm:$0xff]
      %v238 = vld [vmem:[%s1 + $0x120] sm:$0xff]
      %v239 = vld [vmem:[%s1 + $0x128] sm:$0xff]
      %v240 = vld [vmem:[%s1 + $0x130] sm:$0xff]
      %v241 = vld [vmem:[%s1 + $0x138] sm:$0xff]
      %v242 = vld [vmem:[%s1 + $0x140] sm:$0xff]
      %v243 = vld [vmem:[%s1 + $0x148] sm:$0xff]
      %v244 = vld [vmem:[%s1 + $0x150] sm:$0xff]
      %v245 = vld [vmem:[%s1 + $0x158] sm:$0xff]
      %v246 = vld [vmem:[%s1 + $0x160] sm:$0xff]
      %v247 = vld [vmem:[%s1 + $0x168] sm:$0xff]
      %v248 = vld [vmem:[%s1 + $0x170] sm:$0xff]
      %v249 = vld [vmem:[%s1 + $0x178] sm:$0xff]
      %v250 = vld [vmem:[%s1 + $0x180] sm:$0xff]
      %v251 = vld [vmem:[%s1 + $0x188] sm:$0xff]
      %v252 = vld [vmem:[%s1 + $0x190] sm:$0xff]
      %v253 = vld [vmem:[%s1 + $0x198] sm:$0xff]
      %v254 = vld [vmem:[%s1 + $0x1a0] sm:$0xff]
      %v255 = vld [vmem:[%s1 + $0x1a8] sm:$0xff]
      %v256 = vld [vmem:[%s1 + $0x1b0] sm:$0xff]
      %v257 = vld [vmem:[%s1 + $0x1b8] sm:$0xff]
      %v258 = vld [vmem:[%s1 + $0x1c0] sm:$0xff]
      %v259 = vld [vmem:[%s1 + $0x1c8] sm:$0xff]
      %v260 = vld [vmem:[%s1 + $0x1d0] sm:$0xff]
      %v261 = vld [vmem:[%s1 + $0x1d8] sm:$0xff]
      %v262 = vld [vmem:[%s1 + $0x1e0] sm:$0xff]
      %v263 = vld [vmem:[%s1 + $0x1e8] sm:$0xff]
      %v264 = vld [vmem:[%s1 + $0x1f0] sm:$0xff]
      %v265 = vld [vmem:[%s1 + $0x1f8] sm:$0xff]
      %v266 = vld [vmem:[%s1 + $0x200] sm:$0xff]
      %v267 = vld [vmem:[%s1 + $0x208] sm:$0xff]
      %v268 = vld [vmem:[%s1 + $0x210] sm:$0xff]
      %v269 = vld [vmem:[%s1 + $0x218] sm:$0xff]
      %v270 = vld [vmem:[%s1 + $0x220] sm:$0xff]
      %v271 = vld [vmem:[%s1 + $0x228] sm:$0xff]
      %v272 = vld [vmem:[%s1 + $0x230] sm:$0xff]
      %v273 = vld [vmem:[%s1 + $0x238] sm:$0xff]
      %v274 = vld [vmem:[%s1 + $0x240] sm:$0xff]
      %v275 = vld [vmem:[%s1 + $0x248] sm:$0xff]
      %v276 = vld [vmem:[%s1 + $0x250] sm:$0xff]
      %v277 = vld [vmem:[%s1 + $0x258] sm:$0xff]
      %v278 = vld [vmem:[%s1 + $0x260] sm:$0xff]
      %v279 = vld [vmem:[%s1 + $0x268] sm:$0xff]
      %v280 = vld [vmem:[%s1 + $0x270] sm:$0xff]
      %v281 = vld [vmem:[%s1 + $0x278] sm:$0xff]
      %v282 = vld [vmem:[%s1 + $0x280] sm:$0xff]
      %v283 = vld [vmem:[%s1 + $0x288] sm:$0xff]
      %v284 = vld [vmem:[%s1 + $0x290] sm:$0xff]
      %v285 = vld [vmem:[%s1 + $0x298] sm:$0xff]
      %v286 = vld [vmem:[%s1 + $0x2a0] sm:$0xff]
      %v287 = vld [vmem:[%s1 + $0x2a8] sm:$0xff]
      %v288 = vld [vmem:[%s1 + $0x2b0] sm:$0xff]
      %v289 = vld [vmem:[%s1 + $0x2b8] sm:$0xff]
      %v290 = vld [vmem:[%s1 + $0x2c0] sm:$0xff]
      %v291 = vld [vmem:[%s1 + $0x2c8] sm:$0xff]
      %v292 = vld [vmem:[%s1 + $0x2d0] sm:$0xff]
      %v293 = vld [vmem:[%s1 + $0x2d8] sm:$0xff]
      %v294 = vld [vmem:[%s1 + $0x2e0] sm:$0xff]
      %v295 = vld [vmem:[%s1 + $0x2e8] sm:$0xff]
      %v296 = vld [vmem:[%s1 + $0x2f0] sm:$0xff]
      %v297 = vld [vmem:[%s1 + $0x2f8] sm:$0xff]
      %v298 = vld [vmem:[%s1 + $0x300] sm:$0xff]
      %v299 = vld [vmem:[%s1 + $0x308] sm:$0xff]
      %v300 = vld [vmem:[%s1 + $0x310] sm:$0xff]
      %v301 = vld [vmem:[%s1 + $0x318] sm:$0xff]
      %v302 = vld [vmem:[%s1 + $0x320] sm:$0xff]
      %v303 = vld [vmem:[%s1 + $0x328] sm:$0xff]
      %v304 = vld [vmem:[%s1 + $0x330] sm:$0xff]
      %v305 = vld [vmem:[%s1 + $0x338] sm:$0xff]
      %v306 = vld [vmem:[%s1 + $0x340] sm:$0xff]
      %v307 = vld [vmem:[%s1 + $0x348] sm:$0xff]
      %v308 = vld [vmem:[%s1 + $0x350] sm:$0xff]
      %v309 = vld [vmem:[%s1 + $0x358] sm:$0xff]
      %v310 = vld [vmem:[%s1 + $0x360] sm:$0xff]
      %v311 = vld [vmem:[%s1 + $0x368] sm:$0xff]
      %v312 = vld [vmem:[%s1 + $0x370] sm:$0xff]
      %v313 = vld [vmem:[%s1 + $0x378] sm:$0xff]
      %v314 = vld [vmem:[%s1 + $0x380] sm:$0xff]
      %v315 = vld [vmem:[%s1 + $0x388] sm:$0xff]
      %v316 = vld [vmem:[%s1 + $0x390] sm:$0xff]
      %v317 = vld [vmem:[%s1 + $0x398] sm:$0xff]
      %v318 = vld [vmem:[%s1 + $0x3a0] sm:$0xff]
      %v319 = vld [vmem:[%s1 + $0x3a8] sm:$0xff]
      %v320 = vld [vmem:[%s1 + $0x3b0] sm:$0xff]
      %v321 = vld [vmem:[%s1 + $0x3b8] sm:$0xff]
      %v322 = vld [vmem:[%s1 + $0x3c0] sm:$0xff]
      %v323 = vld [vmem:[%s1 + $0x3c8] sm:$0xff]
      %v324 = vld [vmem:[%s1 + $0x3d0] sm:$0xff]
      %v325 = vld [vmem:[%s1 + $0x3d8] sm:$0xff]
      %v326 = vld [vmem:[%s1 + $0x3e0] sm:$0xff]
      %v327 = vld [vmem:[%s1 + $0x3e8] sm:$0xff]
      %v328 = vld [vmem:[%s1 + $0x3f0] sm:$0xff]
      %v329 = vld [vmem:[%s1 + $0x3f8] sm:$0xff]
      %v330 = vpack.c.bf16 %v203, %v202
      %v331 = vpack.c.bf16 %v205, %v204
      %v332 = vpack.c.bf16 %v207, %v206
      %v333 = vpack.c.bf16 %v209, %v208
      %v334 = vpack.c.bf16 %v211, %v210
      %v335 = vpack.c.bf16 %v213, %v212
      %v336 = vpack.c.bf16 %v215, %v214
      %v337 = vpack.c.bf16 %v217, %v216
      %v338 = vpack.c.bf16 %v219, %v218
      %v339 = vpack.c.bf16 %v221, %v220
      %v340 = vpack.c.bf16 %v223, %v222
      %v341 = vpack.c.bf16 %v225, %v224
      %v342 = vpack.c.bf16 %v227, %v226
      %v343 = vpack.c.bf16 %v229, %v228
      %v344 = vpack.c.bf16 %v231, %v230
      %v345 = vpack.c.bf16 %v233, %v232
      %v346 = vpack.c.bf16 %v235, %v234
      %v347 = vpack.c.bf16 %v237, %v236
      %v348 = vpack.c.bf16 %v239, %v238
      %v349 = vpack.c.bf16 %v241, %v240
      %v350 = vpack.c.bf16 %v243, %v242
      %v351 = vpack.c.bf16 %v245, %v244
      %v352 = vpack.c.bf16 %v247, %v246
      %v353 = vpack.c.bf16 %v249, %v248
      %v354 = vpack.c.bf16 %v251, %v250
      %v355 = vpack.c.bf16 %v253, %v252
      %v356 = vpack.c.bf16 %v255, %v254
      %v357 = vpack.c.bf16 %v257, %v256
      %v358 = vpack.c.bf16 %v259, %v258
      %v359 = vpack.c.bf16 %v261, %v260
      %v360 = vpack.c.bf16 %v263, %v262
      %v361 = vpack.c.bf16 %v265, %v264
      %v362 = vpack.c.bf16 %v267, %v266
      %v363 = vpack.c.bf16 %v269, %v268
      %v364 = vpack.c.bf16 %v271, %v270
      %v365 = vpack.c.bf16 %v273, %v272
      %v366 = vpack.c.bf16 %v275, %v274
      %v367 = vpack.c.bf16 %v277, %v276
      %v368 = vpack.c.bf16 %v279, %v278
      %v369 = vpack.c.bf16 %v281, %v280
      %v370 = vpack.c.bf16 %v283, %v282
      %v371 = vpack.c.bf16 %v285, %v284
      %v372 = vpack.c.bf16 %v287, %v286
      %v373 = vpack.c.bf16 %v289, %v288
      %v374 = vpack.c.bf16 %v291, %v290
      %v375 = vpack.c.bf16 %v293, %v292
      %v376 = vpack.c.bf16 %v295, %v294
      %v377 = vpack.c.bf16 %v297, %v296
      %v378 = vpack.c.bf16 %v299, %v298
      %v379 = vpack.c.bf16 %v301, %v300
      %v380 = vpack.c.bf16 %v303, %v302
      %v381 = vpack.c.bf16 %v305, %v304
      %v382 = vpack.c.bf16 %v307, %v306
      %v383 = vpack.c.bf16 %v309, %v308
      %v384 = vpack.c.bf16 %v311, %v310
      %v385 = vpack.c.bf16 %v313, %v312
      %v386 = vpack.c.bf16 %v315, %v314
      %v387 = vpack.c.bf16 %v317, %v316
      %v388 = vpack.c.bf16 %v319, %v318
      %v389 = vpack.c.bf16 %v321, %v320
      %v390 = vpack.c.bf16 %v323, %v322
      %v391 = vpack.c.bf16 %v325, %v324
      %v392 = vpack.c.bf16 %v327, %v326
      %v393 = vpack.c.bf16 %v329, %v328
      %v394 = vld [vmem:[%s2] sm:$0x1]
      %v396 = vlaneseq
      %v397 = vshrl.u32 %v396, 7
      %v398 = vsub.s32 0, %v397
      %v399 = vrot.slane %v394, %v398
      %401 = vmatprep.subr.bf16.mxu0 0
      %402 = vmatpush1.bf16.msra.mxu0 %v330
      %403 = vmatprep.subr.bf16.mxu0 0
      %404 = vmatpush1.bf16.msra.mxu0 %v331
      %405 = vmatprep.subr.bf16.mxu0 0
      %406 = vmatpush1.bf16.msra.mxu0 %v332
      %407 = vmatprep.subr.bf16.mxu0 0
      %408 = vmatpush1.bf16.msra.mxu0 %v333
      %409 = vmatprep.subr.bf16.mxu0 0
      %410 = vmatpush1.bf16.msra.mxu0 %v334
      %411 = vmatprep.subr.bf16.mxu0 0
      %412 = vmatpush1.bf16.msra.mxu0 %v335
      %413 = vmatprep.subr.bf16.mxu0 0
      %414 = vmatpush1.bf16.msra.mxu0 %v336
      %415 = vmatprep.subr.bf16.mxu0 0
      %416 = vmatpush1.bf16.msra.mxu0 %v337
      %417 = vmatprep.subr.bf16.mxu0 0
      %418 = vmatpush1.bf16.msra.mxu0 %v338
      %419 = vmatprep.subr.bf16.mxu0 0
      %420 = vmatpush1.bf16.msra.mxu0 %v339
      %421 = vmatprep.subr.bf16.mxu0 0
      %422 = vmatpush1.bf16.msra.mxu0 %v340
      %423 = vmatprep.subr.bf16.mxu0 0
      %424 = vmatpush1.bf16.msra.mxu0 %v341
      %425 = vmatprep.subr.bf16.mxu0 0
      %426 = vmatpush1.bf16.msra.mxu0 %v342
      %427 = vmatprep.subr.bf16.mxu0 0
      %428 = vmatpush1.bf16.msra.mxu0 %v343
      %429 = vmatprep.subr.bf16.mxu0 0
      %430 = vmatpush1.bf16.msra.mxu0 %v344
      %431 = vmatprep.subr.bf16.mxu0 0
      %432 = vmatpush1.bf16.msra.mxu0 %v345
      %433 = vmatprep.mubr.bf16.mxu0 %v195
      %434 = vmatmul.mubr.bf16.gmra.mrb[0].mxu0 %v194
      %v435 = vpop.f32.mrb[0].mxu0
      %v436 = vadd.f32 %v399, %v435
      %v437 = vpop.f32.mrb[0].mxu0
      %v438 = vpop.f32.mrb[0].mxu0
      %v439 = vadd.f32 %v399, %v438
      %v440 = vpop.f32.mrb[0].mxu0
      %441 = vdwg.mxu0
      %442 = vmatprep.subr.bf16.mxu0 0
      %443 = vmatpush1.bf16.msra.mxu0 %v346
      %444 = vmatprep.subr.bf16.mxu0 0
      %445 = vmatpush1.bf16.msra.mxu0 %v347
      %446 = vmatprep.subr.bf16.mxu0 0
      %447 = vmatpush1.bf16.msra.mxu0 %v348
      %448 = vmatprep.subr.bf16.mxu0 0
      %449 = vmatpush1.bf16.msra.mxu0 %v349
      %450 = vmatprep.subr.bf16.mxu0 0
      %451 = vmatpush1.bf16.msra.mxu0 %v350
      %452 = vmatprep.subr.bf16.mxu0 0
      %453 = vmatpush1.bf16.msra.mxu0 %v351
      %454 = vmatprep.subr.bf16.mxu0 0
      %455 = vmatpush1.bf16.msra.mxu0 %v352
      %456 = vmatprep.subr.bf16.mxu0 0
      %457 = vmatpush1.bf16.msra.mxu0 %v353
      %458 = vmatprep.subr.bf16.mxu0 0
      %459 = vmatpush1.bf16.msra.mxu0 %v354
      %460 = vmatprep.subr.bf16.mxu0 0
      %461 = vmatpush1.bf16.msra.mxu0 %v355
      %462 = vmatprep.subr.bf16.mxu0 0
      %463 = vmatpush1.bf16.msra.mxu0 %v356
      %464 = vmatprep.subr.bf16.mxu0 0
      %465 = vmatpush1.bf16.msra.mxu0 %v357
      %466 = vmatprep.subr.bf16.mxu0 0
      %467 = vmatpush1.bf16.msra.mxu0 %v358
      %468 = vmatprep.subr.bf16.mxu0 0
      %469 = vmatpush1.bf16.msra.mxu0 %v359
      %470 = vmatprep.subr.bf16.mxu0 0
      %471 = vmatpush1.bf16.msra.mxu0 %v360
      %472 = vmatprep.subr.bf16.mxu0 0
      %473 = vmatpush1.bf16.msra.mxu0 %v361
      %474 = vmatprep.mubr.bf16.mxu0 %v197
      %475 = vmatmul.mubr.bf16.gmra.mrb[0].mxu0 %v196
      %v476 = vpop.f32.mrb[0].mxu0
      %v477 = vadd.f32 %v436, %v476
      %v478 = vpop.f32.mrb[0].mxu0
      %v479 = vpop.f32.mrb[0].mxu0
      %v480 = vadd.f32 %v439, %v479
      %v481 = vpop.f32.mrb[0].mxu0
      %482 = vdwg.mxu0
      %483 = vmatprep.subr.bf16.mxu0 0
      %484 = vmatpush1.bf16.msra.mxu0 %v362
      %485 = vmatprep.subr.bf16.mxu0 0
      %486 = vmatpush1.bf16.msra.mxu0 %v363
      %487 = vmatprep.subr.bf16.mxu0 0
      %488 = vmatpush1.bf16.msra.mxu0 %v364
      %489 = vmatprep.subr.bf16.mxu0 0
      %490 = vmatpush1.bf16.msra.mxu0 %v365
      %491 = vmatprep.subr.bf16.mxu0 0
      %492 = vmatpush1.bf16.msra.mxu0 %v366
      %493 = vmatprep.subr.bf16.mxu0 0
      %494 = vmatpush1.bf16.msra.mxu0 %v367
      %495 = vmatprep.subr.bf16.mxu0 0
      %496 = vmatpush1.bf16.msra.mxu0 %v368
      %497 = vmatprep.subr.bf16.mxu0 0
      %498 = vmatpush1.bf16.msra.mxu0 %v369
      %499 = vmatprep.subr.bf16.mxu0 0
      %500 = vmatpush1.bf16.msra.mxu0 %v370
      %501 = vmatprep.subr.bf16.mxu0 0
      %502 = vmatpush1.bf16.msra.mxu0 %v371
      %503 = vmatprep.subr.bf16.mxu0 0
      %504 = vmatpush1.bf16.msra.mxu0 %v372
      %505 = vmatprep.subr.bf16.mxu0 0
      %506 = vmatpush1.bf16.msra.mxu0 %v373
      %507 = vmatprep.subr.bf16.mxu0 0
      %508 = vmatpush1.bf16.msra.mxu0 %v374
      %509 = vmatprep.subr.bf16.mxu0 0
      %510 = vmatpush1.bf16.msra.mxu0 %v375
      %511 = vmatprep.subr.bf16.mxu0 0
      %512 = vmatpush1.bf16.msra.mxu0 %v376
      %513 = vmatprep.subr.bf16.mxu0 0
      %514 = vmatpush1.bf16.msra.mxu0 %v377
      %515 = vmatprep.mubr.bf16.mxu0 %v199
      %516 = vmatmul.mubr.bf16.gmra.mrb[0].mxu0 %v198
      %v517 = vpop.f32.mrb[0].mxu0
      %v518 = vadd.f32 %v477, %v517
      %v519 = vpop.f32.mrb[0].mxu0
      %v520 = vpop.f32.mrb[0].mxu0
      %v521 = vadd.f32 %v480, %v520
      %v522 = vpop.f32.mrb[0].mxu0
      %523 = vdwg.mxu0
      %524 = vmatprep.subr.bf16.mxu0 0
      %525 = vmatpush1.bf16.msra.mxu0 %v378
      %526 = vmatprep.subr.bf16.mxu0 0
      %527 = vmatpush1.bf16.msra.mxu0 %v379
      %528 = vmatprep.subr.bf16.mxu0 0
      %529 = vmatpush1.bf16.msra.mxu0 %v380
      %530 = vmatprep.subr.bf16.mxu0 0
      %531 = vmatpush1.bf16.msra.mxu0 %v381
      %532 = vmatprep.subr.bf16.mxu0 0
      %533 = vmatpush1.bf16.msra.mxu0 %v382
      %534 = vmatprep.subr.bf16.mxu0 0
      %535 = vmatpush1.bf16.msra.mxu0 %v383
      %536 = vmatprep.subr.bf16.mxu0 0
      %537 = vmatpush1.bf16.msra.mxu0 %v384
      %538 = vmatprep.subr.bf16.mxu0 0
      %539 = vmatpush1.bf16.msra.mxu0 %v385
      %540 = vmatprep.subr.bf16.mxu0 0
      %541 = vmatpush1.bf16.msra.mxu0 %v386
      %542 = vmatprep.subr.bf16.mxu0 0
      %543 = vmatpush1.bf16.msra.mxu0 %v387
      %544 = vmatprep.subr.bf16.mxu0 0
      %545 = vmatpush1.bf16.msra.mxu0 %v388
      %546 = vmatprep.subr.bf16.mxu0 0
      %547 = vmatpush1.bf16.msra.mxu0 %v389
      %548 = vmatprep.subr.bf16.mxu0 0
      %549 = vmatpush1.bf16.msra.mxu0 %v390
      %550 = vmatprep.subr.bf16.mxu0 0
      %551 = vmatpush1.bf16.msra.mxu0 %v391
      %552 = vmatprep.subr.bf16.mxu0 0
      %553 = vmatpush1.bf16.msra.mxu0 %v392
      %554 = vmatprep.subr.bf16.mxu0 0
      %555 = vmatpush1.bf16.msra.mxu0 %v393
      %556 = vmatprep.mubr.bf16.mxu0 %v201
      %557 = vmatmul.mubr.bf16.gmra.mrb[0].mxu0 %v200
      %v558 = vpop.f32.mrb[0].mxu0
      %v559 = vadd.f32 %v518, %v558
      %v560 = vpop.f32.mrb[0].mxu0
      %v561 = vpop.f32.mrb[0].mxu0
      %v562 = vadd.f32 %v521, %v561
      %v563 = vpop.f32.mrb[0].mxu0
      %564 = vdwg.mxu0
      %vm565 = vcmask 80896
      %566 = vst.msk [vmem:[%s175] sm:$0xff] %vm565, %v559
      %567 = vst.msk [vmem:[%s175 + $0x8] sm:$0xff] %vm565, %v562
      %s568 = smul.u32 2, %s14
      %p569 = scmp.lt.s32.totalorder %s568, 3
      %s570 = scalar_select %p569, %s568, 3
      %s571 = smul.addr %s570, 8
      %s572 = scalar_lea.vmem %s3, %s571
      // Predicated region
      $region33: #{linear_net_forward.1} parent=31 // pred_check
        %p573 = pneg %p100
      $region34: #{linear_net_forward.1} parent=31 // pred_check_branch
        %575 = sbr.rel (%p573) target = $region36
      $region35: #{linear_net_forward.1} parent=31 // pred_region
        %s576 = smul.u32 2, %s14
      $region36: #{linear_net_forward.1} parent=31 // pred_fallthru
        _
    $region32: #{linear_net_forward.1} parent=5 // pred_fallthru
      _
    %p577 = scmp.le.s32.totalorder 2, %s9
    // Predicated region
    $region37: #{linear_net_forward.1} parent=5 // pred_check
      %p578 = pneg %p577
    $region38: #{linear_net_forward.1} parent=5 // pred_check_branch
      %580 = sbr.rel (%p578) target = $region40
    $region39: #{linear_net_forward.1} parent=5 // pred_region
      %s581 = ssub.s32 %s9, 2
      // Predicated region
      $region41: #{linear_net_forward.1} parent=39 // pred_check
        %p582 = pneg %p106
      $region42: #{linear_net_forward.1} parent=39 // pred_check_branch
        %584 = sbr.rel (%p582) target = $region44
      $region43: #{linear_net_forward.1} parent=39 // pred_region
        %s585 = smul.u32 2, %s15
        %p586 = scmp.lt.s32.totalorder %s585, 3
        %s587 = scalar_select %p586, %s585, 3
        %s588 = smul.addr %s587, 8
        %s589 = scalar_lea.vmem %s3, %s588
      $region44: #{linear_net_forward.1} parent=39 // pred_fallthru
        _
    $region40: #{linear_net_forward.1} parent=5 // pred_fallthru
      _
  $region6: #{linear_net_forward.1} parent=0 // loop_footer
    %s13 = sadd.s32 1, %s9
  $region7: #{linear_net_forward.1} parent=0 // loop_footer_branch
    %8 = sbr.rel target = $region3
  $region8: #{linear_net_forward.1} parent=0 // loop_exit
    _

</llo_original>
